<compile_context>
chip_gen: v5e
topology: v5e:2x2
jax: 0.10.0
libtpu: 0.0.40
codegen_flags: <defaults>
</compile_context>

<pallas_src>
import jax
import jax.numpy as jnp
from jax import lax
from jax.experimental import pallas as pl
from jax.experimental.pallas import tpu as pltpu

_MIB = 1 << 20


def _score_head_kernel(x_ref, w1_ref, b1_ref, w2_ref, b2_ref, o_ref, acc_ref):
    # x_ref : (bm, tk)  CLS rows (already in mxu_dtype), K-slice of hidden
    # w1_ref: (tk, H)   dense weight, pre-transposed to (in, out), mxu_dtype
    # b1_ref: (1, H)    dense bias, f32
    # w2_ref: (1, H)    out_proj weight, f32
    # b2_ref: (1,)      out_proj bias, SMEM scalar
    # o_ref : (1, bm)   lane-dense output block (batch on the lane axis)
    # acc_ref: (bm, H)  f32 accumulator scratch
    k = pl.program_id(1)

    @pl.when(k == 0)
    def _():
        acc_ref[...] = jnp.zeros_like(acc_ref)

    # Dense matmul on the MXU; operands arrive already in the MXU dtype
    # (cast done once in the wrapper), accumulation stays f32.
    acc_ref[...] += jnp.dot(x_ref[...], w1_ref[...],
                            preferred_element_type=jnp.float32)

    @pl.when(k == pl.num_programs(1) - 1)
    def _():
        # Bias + ReLU in f32 (v5e has no bf16 VPU; accumulation is f32 anyway).
        h = jnp.maximum(acc_ref[...] + b1_ref[...], 0.0)
        # out_proj: (1, H) . (bm, H)^T -> (1, bm), kept in f32 regardless of
        # mxu_dtype -- only bm*H FLOPs once per batch tile, hidden under the
        # next weight DMA, and avoids re-rounding post-ReLU activations.
        out = lax.dot_general(
            w2_ref[...], h, (((1,), (1,)), ((), ())),
            preferred_element_type=jnp.float32)
        o_ref[...] = (out + b2_ref[0]).astype(o_ref.dtype)


def _footprint_bytes(bm, tk, H, itemsize):
    wbuf = 2 * tk * H * itemsize          # dense weight (double-buffered)
    xbuf = 2 * bm * tk * itemsize         # CLS activations (double-buffered)
    acc = bm * H * 4                      # f32 accumulator scratch
    small = 4 * H * 4 + 2 * bm * 4 + 4096  # b1, w2, output blocks, slack
    return wbuf + xbuf + acc + small


def _select_tiles(B, H, itemsize, *, block_b, vmem_budget):
    """Pick (bm, tk) so the working set fits `vmem_budget` (v7x-safe)."""
    acc_budget = vmem_budget // 2
    # Prefer nb == 1 (HxH weight streamed exactly once) whenever the f32
    # accumulator fits; otherwise use a lane-aligned (multiple-of-128) tile so
    # the (1, bm) output block is valid and stores stay unmasked.
    bm_max = min(block_b, max(128, acc_budget // (H * 4)))
    if B <= bm_max:
        bm = B
    else:
        bm = (bm_max // 128) * 128
    # Contraction tile: tk == H makes the weight grid-resident (constant index
    # map -> DMA'd once for the whole grid); otherwise the largest
    # hardware-friendly divisor of H that fits the budget.
    candidates = [H] + [t for t in (512, 256, 128) if t < H and H % t == 0]
    tk = candidates[-1]
    for t in candidates:
        if _footprint_bytes(bm, t, H, itemsize) <= vmem_budget:
            tk = t
            break
    return bm, tk


def score_head(features, w_dense, b_dense, w_out, b_out, *,
               mxu_dtype=jnp.float32, block_b=1024,
               vmem_budget_bytes=40 * _MIB):
    """ScoreHead forward. features: [B, T, H]. Returns [B, 1] float32.

    w_dense: (H, H) PyTorch (out, in); b_dense: (H,); w_out: (1, H); b_out: (1,).
    mxu_dtype: dtype of the HBM weight/activation stream fed to the MXU
    (jnp.bfloat16 recommended on v6e/v7x; accumulation stays f32 either way).
    block_b: upper bound on the batch tile (clamped to >= 128 when tiling).
    vmem_budget_bytes: working-set budget used for tile selection; the default
    (40 MiB) leaves headroom on v7x's 64 MiB VMEM.
    """
    B, T, H = features.shape
    block_b = max(int(block_b), 128)

    # CLS slice to a contiguous [B, H] activation in the wrapper: one small
    # strided read + dense write instead of strided per-tile DMAs.
    x = features[:, 0, :]

    # Narrow the HBM streams once, outside the kernel (bf16/fp8 halves/quarters
    # the dominant weight DMA); pre-transpose to (in, out) so the kernel's big
    # dot is a plain last-first contraction.  For jit-constant weights both
    # fold away at trace time.
    x_mxu = x.astype(mxu_dtype)
    w1 = w_dense.T.astype(mxu_dtype)            # (H_in, H_out)
    b1 = b_dense.reshape(1, H).astype(jnp.float32)
    w2 = w_out.astype(jnp.float32)              # (1, H), kept f32 (tiny dot)
    b2 = b_out.astype(jnp.float32)              # (1,), SMEM scalar

    itemsize = jnp.dtype(mxu_dtype).itemsize
    bm, tk = _select_tiles(B, H, itemsize, block_b=block_b,
                           vmem_budget=vmem_budget_bytes)
    nb = pl.cdiv(B, bm)
    nk = H // tk

    # Size the scoped VMEM limit to the real footprint (+ headroom); default
    # scoped limits (16 MiB on v5e, 32 MiB on v6e/v7x) would otherwise cap the
    # tile size / pipeline depth.
    footprint = _footprint_bytes(bm, tk, H, itemsize)
    vmem_limit = int(min(64 * _MIB, max(footprint + 8 * _MIB, 16 * _MIB)))

    out_lane = pl.pallas_call(
        _score_head_kernel,
        out_shape=jax.ShapeDtypeStruct((1, B), jnp.float32),
        grid=(nb, nk),
        in_specs=[
            # Contiguous CLS rows, K-sliced on the hidden dim.
            pl.BlockSpec((bm, tk), lambda i, k: (i, k)),
            # Dense weight, (in, out) layout, K-sliced on "in".  When nk == 1
            # the index map is constant -> weight DMA'd exactly once.
            pl.BlockSpec((tk, H), lambda i, k: (k, 0)),
            pl.BlockSpec((1, H), lambda i, k: (0, 0)),
            pl.BlockSpec((1, H), lambda i, k: (0, 0)),
            # out_proj bias: single scalar -> SMEM, not a padded VMEM tile.
            pl.BlockSpec(memory_space=pltpu.MemorySpace.SMEM),
        ],
        out_specs=pl.BlockSpec((1, bm), lambda i, k: (0, i)),
        scratch_shapes=[pltpu.VMEM((bm, H), jnp.float32)],
        compiler_params=pltpu.CompilerParams(
            dimension_semantics=("parallel", "arbitrary"),
            vmem_limit_bytes=vmem_limit),
    )(x_mxu, w1, b1, w2, b2)

    # (1, B) -> (B, 1): identical row-major order, free reshape.
    return out_lane.reshape(B, 1)


if __name__ == "__main__":
    def ref_score_head(features, w_dense, b_dense, w_out, b_out):
        x = features[:, 0, :]
        h = jnp.maximum(x @ w_dense.T + b_dense, 0.0)
        return h @ w_out.T + b_out

    key = jax.random.PRNGKey(0)
    k_feat, k_w1, k_b1, k_w2, k_b2, k_feat2 = jax.random.split(key, 6)

    B, T, H = 2, 8, 32
    features = jax.random.normal(k_feat, (B, T, H), dtype=jnp.float32)
    # nn.Linear parameter shapes: (out_features, in_features) / (out_features,)
    w_dense = jax.random.normal(k_w1, (H, H), dtype=jnp.float32) * 0.05
    b_dense = jax.random.normal(k_b1, (H,), dtype=jnp.float32) * 0.05
    w_out = jax.random.normal(k_w2, (1, H), dtype=jnp.float32) * 0.05
    b_out = jax.random.normal(k_b2, (1,), dtype=jnp.float32) * 0.05

    # Case 1: f32 MXU operands -> exact parity with the reference.
    ref = ref_score_head(features, w_dense, b_dense, w_out, b_out)
    out = jax.block_until_ready(
        score_head(features, w_dense, b_dense, w_out, b_out))
    assert out.shape == (B, 1)
    assert jnp.allclose(out, ref, atol=1e-5, rtol=1e-5)

    # Case 2: bf16 weight/activation HBM stream (v6e/v7x recommendation),
    # f32 accumulation and f32 bias/ReLU/out_proj -> looser tolerance.
    out_bf16 = jax.block_until_ready(
        score_head(features, w_dense, b_dense, w_out, b_out,
                   mxu_dtype=jnp.bfloat16))
    assert jnp.allclose(out_bf16, ref, atol=2e-2, rtol=2e-2)

    # Case 3: batch not divisible by the batch tile -> exercises the padded
    # last batch tile and masked writeback of the (1, bm) output block.
    B2 = 130
    features2 = jax.random.normal(k_feat2, (B2, T, H), dtype=jnp.float32)
    ref2 = ref_score_head(features2, w_dense, b_dense, w_out, b_out)
    out2 = jax.block_until_ready(
        score_head(features2, w_dense, b_dense, w_out, b_out, block_b=128))
    assert out2.shape == (B2, 1)
    assert jnp.allclose(out2, ref2, atol=1e-5, rtol=1e-5)

    print("KERNEL_OK")
</pallas_src>

<mosaic_0001>
module attributes {stable_mosaic.version = 11 : i64} {
  func.func @_score_head_kernel(%arg0: i32, %arg1: i32, %arg2: memref<2x32xf32, #tpu.memory_space<vmem>>, %arg3: memref<32x32xf32, #tpu.memory_space<vmem>>, %arg4: memref<1x32xf32, #tpu.memory_space<vmem>>, %arg5: memref<1x32xf32, #tpu.memory_space<vmem>>, %arg6: memref<1xf32, #tpu.memory_space<smem>>, %arg7: memref<1x2xf32, #tpu.memory_space<vmem>>, %arg8: memref<2x32xf32, #tpu.memory_space<vmem>>) attributes {dimension_semantics = [#tpu.dimension_semantics<parallel>, #tpu.dimension_semantics<arbitrary>], iteration_bounds = array<i64: 1, 1>, scalar_prefetch = 0 : i64, scratch_operands = 1 : i64, tpu.core_type = #tpu.core_type<tc>, window_params = [{transform_indices = @transform_0, window_bounds = array<i64: 2, 32>}, {transform_indices = @transform_1, window_bounds = array<i64: 32, 32>}, {pipeline_mode = #tpu.pipeline_mode<synchronous>, transform_indices = @transform_2, window_bounds = array<i64: 1, 32>}, {pipeline_mode = #tpu.pipeline_mode<synchronous>, transform_indices = @transform_3, window_bounds = array<i64: 1, 32>}, {transform_indices = @transform_4, window_bounds = array<i64: 1>}, {transform_indices = @transform_5, window_bounds = array<i64: 1, 2>}]} {
    %c0_i32 = arith.constant 0 : i32
    %0 = arith.cmpi eq, %arg1, %c0_i32 : i32
    %1 = arith.extui %0 : i1 to i32
    %c0_i32_0 = arith.constant 0 : i32
    %2 = arith.cmpi ne, %1, %c0_i32_0 : i32
    scf.if %2 {
      %cst_10 = arith.constant 0.000000e+00 : f32
      %12 = vector.broadcast %cst_10 : f32 to vector<2x32xf32>
      %c0_11 = arith.constant 0 : index
      %c0_12 = arith.constant 0 : index
      %13 = vector.load %arg8[%c0_11, %c0_12] : memref<2x32xf32, #tpu.memory_space<vmem>>, vector<2x32xf32>
      tpu.vector_store %arg8[%c0_11, %c0_12], %12 {strides = array<i32>} : memref<2x32xf32, #tpu.memory_space<vmem>>, vector<2x32xf32>,
    } else {
    }
    %c0 = arith.constant 0 : index
    %c0_1 = arith.constant 0 : index
    %3 = vector.load %arg8[%c0, %c0_1] : memref<2x32xf32, #tpu.memory_space<vmem>>, vector<2x32xf32>
    %c0_2 = arith.constant 0 : index
    %c0_3 = arith.constant 0 : index
    %4 = vector.load %arg2[%c0_2, %c0_3] : memref<2x32xf32, #tpu.memory_space<vmem>>, vector<2x32xf32>
    %c0_4 = arith.constant 0 : index
    %c0_5 = arith.constant 0 : index
    %5 = vector.load %arg3[%c0_4, %c0_5] : memref<32x32xf32, #tpu.memory_space<vmem>>, vector<32x32xf32>
    %cst = arith.constant dense<0.000000e+00> : vector<2x32xf32>
    %6 = tpu.matmul %4, %5, %cst {dimension_numbers = #tpu.dot_dimension_numbers<[1], [0], [0], [1], [0, 0, 1, 1], [], []>} : vector<2x32xf32>, vector<32x32xf32>, vector<2x32xf32> -> vector<2x32xf32>
    %7 = arith.addf %3, %6 : vector<2x32xf32>
    %c0_6 = arith.constant 0 : index
    %c0_7 = arith.constant 0 : index
    %8 = vector.load %arg8[%c0_6, %c0_7] : memref<2x32xf32, #tpu.memory_space<vmem>>, vector<2x32xf32>
    tpu.vector_store %arg8[%c0_6, %c0_7], %7 {strides = array<i32>} : memref<2x32xf32, #tpu.memory_space<vmem>>, vector<2x32xf32>,
    %c0_i32_8 = arith.constant 0 : i32
    %9 = arith.cmpi eq, %arg1, %c0_i32_8 : i32
    %10 = arith.extui %9 : i1 to i32
    %c0_i32_9 = arith.constant 0 : i32
    %11 = arith.cmpi ne, %10, %c0_i32_9 : i32
    scf.if %11 {
      %c0_10 = arith.constant 0 : index
      %c0_11 = arith.constant 0 : index
      %12 = vector.load %arg8[%c0_10, %c0_11] : memref<2x32xf32, #tpu.memory_space<vmem>>, vector<2x32xf32>
      %c0_12 = arith.constant 0 : index
      %c0_13 = arith.constant 0 : index
      %13 = vector.load %arg4[%c0_12, %c0_13] : memref<1x32xf32, #tpu.memory_space<vmem>>, vector<1x32xf32>
      %14 = vector.broadcast %13 : vector<1x32xf32> to vector<2x32xf32>
      %15 = arith.addf %12, %14 : vector<2x32xf32>
      %cst_14 = arith.constant 0.000000e+00 : f32
      %16 = vector.broadcast %cst_14 : f32 to vector<2x32xf32>
      %17 = arith.maximumf %15, %16 : vector<2x32xf32>
      %c0_15 = arith.constant 0 : index
      %c0_16 = arith.constant 0 : index
      %18 = vector.load %arg5[%c0_15, %c0_16] : memref<1x32xf32, #tpu.memory_space<vmem>>, vector<1x32xf32>
      %cst_17 = arith.constant dense<0.000000e+00> : vector<1x2xf32>
      %19 = tpu.matmul %18, %17, %cst_17 {dimension_numbers = #tpu.dot_dimension_numbers<[1], [1], [0], [0], [0, 0, 1, 0], [], []>} : vector<1x32xf32>, vector<2x32xf32>, vector<1x2xf32> -> vector<1x2xf32>
      %c0_18 = arith.constant 0 : index
      %20 = memref.load %arg6[%c0_18] : memref<1xf32, #tpu.memory_space<smem>>
      %21 = vector.broadcast %20 : f32 to vector<1x2xf32>
      %22 = arith.addf %19, %21 : vector<1x2xf32>
      %c0_19 = arith.constant 0 : index
      %c0_20 = arith.constant 0 : index
      %23 = vector.load %arg7[%c0_19, %c0_20] : memref<1x2xf32, #tpu.memory_space<vmem>>, vector<1x2xf32>
      tpu.vector_store %arg7[%c0_19, %c0_20], %22 {strides = array<i32>} : memref<1x2xf32, #tpu.memory_space<vmem>>, vector<1x2xf32>,
    } else {
    }
    return
  }
  func.func @transform_0(%arg0: i32, %arg1: i32) -> (i32, i32) {
    %c0_i32 = arith.constant 0 : i32
    return %arg0, %arg1 : i32, i32
  }
  func.func @transform_1(%arg0: i32, %arg1: i32) -> (i32, i32) {
    %c0_i32 = arith.constant 0 : i32
    %c0_i32_0 = arith.constant 0 : i32
    return %arg1, %c0_i32 : i32, i32
  }
  func.func @transform_2(%arg0: i32, %arg1: i32) -> (i32, i32) {
    %c0_i32 = arith.constant 0 : i32
    %c0_i32_0 = arith.constant 0 : i32
    %c0_i32_1 = arith.constant 0 : i32
    return %c0_i32, %c0_i32_0 : i32, i32
  }
  func.func @transform_3(%arg0: i32, %arg1: i32) -> (i32, i32) {
    %c0_i32 = arith.constant 0 : i32
    %c0_i32_0 = arith.constant 0 : i32
    %c0_i32_1 = arith.constant 0 : i32
    return %c0_i32, %c0_i32_0 : i32, i32
  }
  func.func @transform_4(%arg0: i32, %arg1: i32) -> i32 {
    %c0_i32 = arith.constant 0 : i32
    %c0_i32_0 = arith.constant 0 : i32
    return %c0_i32 : i32
  }
  func.func @transform_5(%arg0: i32, %arg1: i32) -> (i32, i32) {
    %c0_i32 = arith.constant 0 : i32
    %c0_i32_0 = arith.constant 0 : i32
    return %c0_i32, %arg0 : i32, i32
  }
}

</mosaic_0001>

<llo_original>
// kernel: tpu_custom_call.1
$region0: #{tpu_custom_call.1}
  #allocation0 [shape = 'u32[]', space=smem, size = 0x4, offset = 0x4, fixed_abs, tag = 'smem constant byte address 0x4 - core index']
  #allocation1 [shape = 'u32[72,128]{1,0:T(1,128)}', space=vmem, size = 0x9000, scoped, tag = 'internal scratch']
  #allocation2 [shape = 'f32[2,32]{1,0:T(2,128)}', space=vmem, size = 0x400, scoped, tag = 'scratch operand']
  #allocation3 [shape = 'f32[1]{0:T(128)S(6)}', space=smem, size = 0x200, scoped, tag = 'scoped memory for tpu_custom_call.1']
  %s0 = inlined_call_operand.vmem [shape: f32[2,32], index: 0, kind: input, shape index: {}]
  %s1 = inlined_call_operand.hbm [shape: f32[32,32], index: 1, kind: input, shape index: {}]
  %s2 = inlined_call_operand.vmem [shape: f32[1,32], index: 2, kind: input, shape index: {}]
  %s3 = inlined_call_operand.vmem [shape: f32[1,32], index: 3, kind: input, shape index: {}]
  %s4 = inlined_call_operand.<no memory space> [shape: f32[1], index: 4, kind: input, shape index: {}]
  %s5 = inlined_call_operand.hbm [shape: f32[1,2], index: 5, kind: output, shape index: {}]
  %s6 = sld [smem:[#allocation0]]
  $region42: #{tpu_custom_call.1} parent=0
    _
  %s8 = ssub.s32 1, %s6
  %s9 = scalar_select 0, %s8, %s6
  %10 = sst [smem:[#allocation3]] %s4
  $region1: #{tpu_custom_call.1} parent=0
    #allocation4 [shape = 'u8[16384]{0}', space=vmem, size = 0x4000, scoped, tag = 'input window, operand 1, single buffered']
    #allocation5 [shape = 's32[1]{0}', space=sflag, size = 0x4, scoped, tag = 'scoped memory for tpu_custom_call.1']
    #allocation6 [shape = 's32[1]{0}', space=sflag, size = 0x4, scoped, tag = 'scoped memory for tpu_custom_call.1']
    #allocation7 [shape = 'u8[512]{0}', space=vmem, size = 0x400, scoped, tag = 'output window, operand 0, single buffered']
    %11 = vsyncpa [#allocation5], 0
    %12 = vsyncpa [#allocation6], 0
    // Predicated region
    $region2: #{tpu_custom_call.1} parent=1 // pred_check
      _
    $region3: #{tpu_custom_call.1} parent=1 // pred_check_branch
      %14 = sbr.rel (0) target = $region5
    $region4: #{tpu_custom_call.1} parent=1 // pred_region
      _
    $region5: #{tpu_custom_call.1} parent=1 // pred_fallthru
      _
    // Predicated region
    $region6: #{tpu_custom_call.1} parent=1 // pred_check
      _
    $region7: #{tpu_custom_call.1} parent=1 // pred_check_branch
      %16 = sbr.rel (0) target = $region9
    $region8: #{tpu_custom_call.1} parent=1 // pred_region
      %18 = vsyncadd [#allocation5], 0
      %s19 = sshll.u32 %s1, 4
      %s20 = int_to_ptr.hbm [resolvable:$true] %s19
      %s21 = sshll.u32 [#allocation4], 4
      %s22 = int_to_ptr.vmem [resolvable:$true] %s21
      %27 = dma.hbm_to_vmem [thread:$0]  %s20, 512, %s22, [#allocation5], 128, 128, 8
    $region9: #{tpu_custom_call.1} parent=1 // pred_fallthru
      _
    // Predicated region
    $region10: #{tpu_custom_call.1} parent=1 // pred_check
      _
    $region11: #{tpu_custom_call.1} parent=1 // pred_check_branch
      %29 = sbr.rel (0) target = $region13
    $region12: #{tpu_custom_call.1} parent=1 // pred_region
      _
    $region13: #{tpu_custom_call.1} parent=1 // pred_fallthru
      _
    // Predicated region
    $region14: #{tpu_custom_call.1} parent=1 // pred_check
      _
    $region15: #{tpu_custom_call.1} parent=1 // pred_check_branch
      %31 = sbr.rel (0) target = $region17
    $region16: #{tpu_custom_call.1} parent=1 // pred_region
      _
    $region17: #{tpu_custom_call.1} parent=1 // pred_fallthru
      _
    // Predicated region
    $region18: #{tpu_custom_call.1} parent=1 // pred_check
      _
    $region19: #{tpu_custom_call.1} parent=1 // pred_check_branch
      %33 = sbr.rel (0) target = $region21
    $region20: #{tpu_custom_call.1} parent=1 // pred_region
      _
    $region21: #{tpu_custom_call.1} parent=1 // pred_fallthru
      _
    // Predicated region
    $region22: #{tpu_custom_call.1} parent=1 // pred_check
      _
    $region23: #{tpu_custom_call.1} parent=1 // pred_check_branch
      %35 = sbr.rel (0) target = $region25
    $region24: #{tpu_custom_call.1} parent=1 // pred_region
      %37 = dma.done [#allocation5], 512
    $region25: #{tpu_custom_call.1} parent=1 // pred_fallthru
      _
    %p38 = scmp.eq.s32.totalorder 0, 0
    // Predicated region
    $region26: #{tpu_custom_call.1} parent=1 // pred_check
      %p39 = pneg %p38
    $region27: #{tpu_custom_call.1} parent=1 // pred_check_branch
      %41 = sbr.rel (%p39) target = $region29
    $region28: #{tpu_custom_call.1} parent=1 // pred_region
      %vm42 = vcmask 254976
      %43 = vst.msk [vmem:[#allocation2] sm:$0x3] %vm42, 0.0
    $region29: #{tpu_custom_call.1} parent=1 // pred_fallthru
      _
    %v44 = vld [vmem:[#allocation2] sm:$0x3]
    %v45 = vld [vmem:[%s0] sm:$0x3]
    %v46 = vld [vmem:[#allocation4] sm:$0xff]
    %v47 = vld [vmem:[#allocation4 + $0x8] sm:$0xff]
    %v48 = vld [vmem:[#allocation4 + $0x10] sm:$0xff]
    %v49 = vld [vmem:[#allocation4 + $0x18] sm:$0xff]
    %vm50 = vcmask 261120
    %v52 = vsel %vm50, %v45, 0
    %54 = vmatpush.msra.mxu0 0.0
    %55 = vmatpush.msra.mxu0 0.0
    %56 = vmatpush.msra.mxu0 0.0
    %57 = vmatpush.msra.mxu0 0.0
    %58 = vmatpush.msra.mxu0 0.0
    %59 = vmatpush.msra.mxu0 0.0
    %60 = vmatpush.msra.mxu0 0.0
    %61 = vmatpush.msra.mxu0 0.0
    %62 = vmatpush.msra.mxu0 0.0
    %63 = vmatpush.msra.mxu0 0.0
    %64 = vmatpush.msra.mxu0 0.0
    %65 = vmatpush.msra.mxu0 0.0
    %66 = vmatpush.msra.mxu0 %v49
    %67 = vmatpush.msra.mxu0 %v48
    %68 = vmatpush.msra.mxu0 %v47
    %69 = vmatpush.msra.mxu0 %v46
    %70 = vmatmul.f32.gmra.mxu0 %v52
    %v71 = vpop.f32.mrf.mxu0
    %v72 = vadd.f32 0.0, %v71
    %73 = vdwg.mxu0
    %v74 = vadd.f32 %v44, %v72
    %vm75 = vcmask 254976
    %76 = vst.msk [vmem:[#allocation2] sm:$0x3] %vm75, %v74
    // Predicated region
    $region30: #{tpu_custom_call.1} parent=1 // pred_check
      %p77 = pneg %p38
    $region31: #{tpu_custom_call.1} parent=1 // pred_check_branch
      %79 = sbr.rel (%p77) target = $region33
    $region32: #{tpu_custom_call.1} parent=1 // pred_region
      %v80 = vld [vmem:[#allocation2] sm:$0x3]
      %v81 = vld [vmem:[%s2] sm:$0x1]
      %v83 = vperm.slane %v81, 0
      %v85 = vadd.f32 %v80, %v83
      %v86 = vmax.f32 %v85, 0.0
      %v87 = vld [vmem:[%s3] sm:$0x1]
      %s88 = sld [smem:[#allocation3]]
      %v89 = vstv %s88
      %v91 = vsel %vm50, %v87, 0
      %v94 = vsel %vm50, %v86, 0
      %96 = vmatpush.xpose.msra.mxu0 0.0
      %97 = vmatpush.xpose.msra.mxu0 0.0
      %98 = vmatpush.xpose.msra.mxu0 0.0
      %99 = vmatpush.xpose.msra.mxu0 0.0
      %100 = vmatpush.xpose.msra.mxu0 0.0
      %101 = vmatpush.xpose.msra.mxu0 0.0
      %102 = vmatpush.xpose.msra.mxu0 0.0
      %103 = vmatpush.xpose.msra.mxu0 0.0
      %104 = vmatpush.xpose.msra.mxu0 0.0
      %105 = vmatpush.xpose.msra.mxu0 0.0
      %106 = vmatpush.xpose.msra.mxu0 0.0
      %107 = vmatpush.xpose.msra.mxu0 0.0
      %108 = vmatpush.xpose.msra.mxu0 0.0
      %109 = vmatpush.xpose.msra.mxu0 0.0
      %110 = vmatpush.xpose.msra.mxu0 0.0
      %111 = vmatpush.xpose.msra.mxu0 %v94
      %112 = vmatmul.f32.gmra.mxu0 %v91
      %v113 = vpop.f32.mrf.mxu0
      %v114 = vadd.f32 %v89, %v113
      %115 = vdwg.mxu0
      %vm116 = vcmask 8192
      %117 = vst.msk [vmem:[#allocation7] sm:$0x1] %vm116, %v114
    $region33: #{tpu_custom_call.1} parent=1 // pred_fallthru
      _
    // Predicated region
    $region34: #{tpu_custom_call.1} parent=1 // pred_check
      _
    $region35: #{tpu_custom_call.1} parent=1 // pred_check_branch
      %119 = sbr.rel (0) target = $region37
    $region36: #{tpu_custom_call.1} parent=1 // pred_region
      %121 = vsyncadd [#allocation6], 0
      %s123 = sshll.u32 [#allocation7], 4
      %s124 = int_to_ptr.vmem [resolvable:$true] %s123
      %s125 = sshll.u32 %s5, 4
      %s126 = int_to_ptr.hbm [resolvable:$true] %s125
      %128 = dma.vmem_to_hbm [thread:$0]  %s124, 16, %s126, [#allocation6]
    $region37: #{tpu_custom_call.1} parent=1 // pred_fallthru
      _
    // Predicated region
    $region38: #{tpu_custom_call.1} parent=1 // pred_check
      _
    $region39: #{tpu_custom_call.1} parent=1 // pred_check_branch
      %130 = sbr.rel (0) target = $region41
    $region40: #{tpu_custom_call.1} parent=1 // pred_region
      %132 = dma.done [#allocation6], 16
    $region41: #{tpu_custom_call.1} parent=1 // pred_fallthru
      _
    %133 = vsyncpa [#allocation5], 1
    %134 = vsyncpa [#allocation6], 1

</llo_original>
